<compile_context>
chip_gen: v7x
topology: tpu7x:2x2x1
jax: 0.10.0
libtpu: 0.0.40
codegen_flags: <defaults>
</compile_context>

<pallas_src>
import functools

import numpy as np
import jax
import jax.numpy as jnp
from jax.experimental import pallas as pl
from jax.experimental.pallas import tpu as pltpu


VMEM_BUDGET_BYTES = 48 * 1024 * 1024   # fits v5e/v6e (128 MiB) and v7x (64 MiB physical)


def _round_up(x, m):
    return ((x + m - 1) // m) * m


def _resident_spec(block_shape, index_map):
    """Constant-index block: single-buffer it (one resident VMEM copy)."""
    try:
        return pl.BlockSpec(block_shape, index_map, pipeline_mode=pl.Buffered(1))
    except TypeError:   # older BlockSpec signature without pipeline_mode
        return pl.BlockSpec(block_shape, index_map)


def _portfolio_kernel(x_ref, w_ref, b_ref, dmask_ref, mu_ref, l_ref, *, mu_pad):
    # x: (TB, D), w: (D, MU_PAD+NN_PAD), b: (1, MU_PAD+NN_PAD), dmask: (1, NN_PAD)
    y = jnp.dot(x_ref[...], w_ref[...], preferred_element_type=jnp.float32)
    y = y + b_ref[...]
    mu_ref[...] = y[:, :mu_pad]                          # 128-lane-aligned slice
    yl = y[:, mu_pad:]
    is_diag = dmask_ref[...] > 0.5                       # (1, NN_PAD), broadcasts over rows
    l_ref[...] = jnp.where(is_diag, jnp.maximum(yl, 0.0) + 1e-5, yl)


def prepare_params(w_mu, b_mu, w_L, b_L, n, *, use_bf16=False):
    """One-time host prep: fold tril scatter into W_L, fuse heads, 128-lane pad,
    and build the (1, NN_PAD) diagonal mask."""
    n = int(n)
    D = int(w_mu.shape[1])
    T = n * (n + 1) // 2
    assert w_mu.shape == (n, D) and w_L.shape == (T, D)
    mu_pad = _round_up(n, 128)
    nn_pad = _round_up(n * n, 128)
    rows, cols = np.tril_indices(n)                 # row-major, same as torch.tril_indices
    l_cols = mu_pad + rows * n + cols               # fused column of tril element k

    W_cat = jnp.zeros((D, mu_pad + nn_pad), jnp.float32)
    W_cat = W_cat.at[:, :n].set(jnp.asarray(w_mu, jnp.float32).T)
    W_cat = W_cat.at[:, l_cols].set(jnp.asarray(w_L, jnp.float32).T)
    b_cat = jnp.zeros((1, mu_pad + nn_pad), jnp.float32)
    b_cat = b_cat.at[0, :n].set(jnp.asarray(b_mu, jnp.float32))
    b_cat = b_cat.at[0, l_cols].set(jnp.asarray(b_L, jnp.float32))

    dmask = np.zeros((1, nn_pad), np.float32)       # diag of row-major (n, n) layout
    dmask[0, np.arange(n) * (n + 1)] = 1.0
    dmask = jnp.asarray(dmask)

    if use_bf16:
        W_cat = W_cat.astype(jnp.bfloat16)          # faster, but loosens the 1e-5 tolerance
    return W_cat, b_cat, dmask


def _pick_batch_tile(B, D, out_w, nn_pad, x_itemsize):
    """Largest TB (multiple of 8, <= 1024) whose double-buffered x/out streams
    plus the single-buffered resident params fit ~80% of the VMEM budget."""
    resident = D * out_w * x_itemsize + out_w * 4 + nn_pad * 4       # W + bias + mask
    budget = int(0.8 * VMEM_BUDGET_BYTES) - resident
    per_row = 2 * D * x_itemsize + 2 * out_w * 4                     # x + (mu, L) double-buffers
    if budget <= per_row * 8:
        # TODO(synk): weight alone (nearly) exceeds the VMEM budget; add a K
        # ("arbitrary", last) grid axis with an f32 accumulator scratch and
        # stream W_cat in K-slices instead of keeping it fully resident.
        return 8
    return max(8, min(1024, (budget // per_row) // 8 * 8))


@jax.jit
def portfolio_net_forward(x, W_cat, b_cat, dmask):
    """x: (B, C, H, W) float with H == n_assets. Returns (mu, L)."""
    B, C, H, W = x.shape
    n = H                                       # torch code uses x.shape[2] for the tril size
    D = C * H * W
    OUT = W_cat.shape[1]
    NN_PAD = dmask.shape[1]
    MU_PAD = OUT - NN_PAD

    x_flat = x.reshape(B, D)                    # same as torch .reshape(B, -1)
    if W_cat.dtype == jnp.bfloat16:
        x_flat = x_flat.astype(jnp.bfloat16)

    tb_budget = _pick_batch_tile(B, D, OUT, NN_PAD, jnp.dtype(W_cat.dtype).itemsize)
    if B <= tb_budget:
        # >= 2 grid steps when there is enough work so the "parallel" batch axis
        # shards across both v7x TensorCores; harmless on 1-TC v5e/v6e.
        TB = _round_up(pl.cdiv(B, 2), 8) if B >= 16 else B
    else:
        TB = tb_budget
    grid = (pl.cdiv(B, TB),)                    # ragged last block handled by Pallas (no pad)

    mu_out, l_out = pl.pallas_call(
        functools.partial(_portfolio_kernel, mu_pad=MU_PAD),
        out_shape=(jax.ShapeDtypeStruct((B, MU_PAD), jnp.float32),
                   jax.ShapeDtypeStruct((B, NN_PAD), jnp.float32)),
        grid=grid,
        in_specs=[
            pl.BlockSpec((TB, D), lambda i: (i, 0)),         # x streams over batch
            _resident_spec((D, OUT), lambda i: (0, 0)),      # fused weight, resident in VMEM
            _resident_spec((1, OUT), lambda i: (0, 0)),      # fused bias, resident
            _resident_spec((1, NN_PAD), lambda i: (0, 0)),   # diag mask, resident
        ],
        out_specs=[
            pl.BlockSpec((TB, MU_PAD), lambda i: (i, 0)),    # lane-dense mu slab
            pl.BlockSpec((TB, NN_PAD), lambda i: (i, 0)),    # lane-dense L_flat slab
        ],
        compiler_params=pltpu.CompilerParams(
            dimension_semantics=("parallel",),
            vmem_limit_bytes=VMEM_BUDGET_BYTES),
    )(x_flat, W_cat, b_cat, dmask)

    mu = mu_out[:, :n]
    L = l_out[:, :n * n].reshape(B, n, n)
    return mu, L


def _reference(x, w_mu, b_mu, w_L, b_L):
    """Plain-JAX reference mirroring the PyTorch forward (full-precision matmuls)."""
    B, C, H, W = x.shape
    n = H
    x_flat = x.reshape(B, -1)
    hi = jax.lax.Precision.HIGHEST
    mu = jnp.matmul(x_flat, w_mu.T, precision=hi) + b_mu
    l_flat = jnp.matmul(x_flat, w_L.T, precision=hi) + b_L
    rows, cols = np.tril_indices(n)
    L = jnp.zeros((B, n, n), dtype=jnp.float32)
    L = L.at[:, rows, cols].set(l_flat)
    d = np.arange(n)
    L = L.at[:, d, d].set(jnp.maximum(L[:, d, d], 0.0) + 1e-5)
    return mu, L


if __name__ == "__main__":
    # Small shapes consistent with the module: x.shape[2] must equal n_assets.
    B, C, H, W = 2, 4, 8, 4          # n_assets = 8, input_dim = 4*8*4 = 128
    n_assets = H
    input_dim = C * H * W
    T = n_assets * (n_assets + 1) // 2

    key = jax.random.PRNGKey(0)
    kx, kwm, kbm, kwl, kbl = jax.random.split(key, 5)

    x = jax.random.normal(kx, (B, C, H, W), dtype=jnp.float32)

    # Deterministic parameter init (uniform(-1/sqrt(in), 1/sqrt(in)), like nn.Linear).
    bound = 1.0 / np.sqrt(input_dim)
    w_mu = jax.random.uniform(kwm, (n_assets, input_dim), jnp.float32, -bound, bound)
    b_mu = jax.random.uniform(kbm, (n_assets,), jnp.float32, -bound, bound)
    w_L = jax.random.uniform(kwl, (T, input_dim), jnp.float32, -bound, bound)
    b_L = jax.random.uniform(kbl, (T,), jnp.float32, -bound, bound)

    # One-time parameter prep (hoisted out of the per-call path).
    W_cat, b_cat, dmask = prepare_params(w_mu, b_mu, w_L, b_L, n_assets, use_bf16=False)

    mu, L = portfolio_net_forward(x, W_cat, b_cat, dmask)
    jax.block_until_ready((mu, L))

    mu_ref, L_ref = _reference(x, w_mu, b_mu, w_L, b_L)
    np.testing.assert_allclose(np.asarray(mu), np.asarray(mu_ref), rtol=1e-4, atol=1e-5)
    np.testing.assert_allclose(np.asarray(L), np.asarray(L_ref), rtol=1e-4, atol=1e-5)

    print("KERNEL_OK")
</pallas_src>

<mosaic_0001>
module attributes {stable_mosaic.version = 11 : i64} {
  func.func @_portfolio_kernel(%arg0: i32, %arg1: memref<2x128xf32, #tpu.memory_space<vmem>>, %arg2: memref<128x256xf32, #tpu.memory_space<vmem>>, %arg3: memref<1x256xf32, #tpu.memory_space<vmem>>, %arg4: memref<1x128xf32, #tpu.memory_space<vmem>>, %arg5: memref<2x128xf32, #tpu.memory_space<vmem>>, %arg6: memref<2x128xf32, #tpu.memory_space<vmem>>) attributes {dimension_semantics = [#tpu.dimension_semantics<parallel>], iteration_bounds = array<i64: 1>, scalar_prefetch = 0 : i64, scratch_operands = 0 : i64, tpu.core_type = #tpu.core_type<tc>, window_params = [{transform_indices = @transform_0, window_bounds = array<i64: 2, 128>}, {pipeline_mode = #tpu.pipeline_mode<synchronous>, transform_indices = @transform_1, window_bounds = array<i64: 128, 256>}, {pipeline_mode = #tpu.pipeline_mode<synchronous>, transform_indices = @transform_2, window_bounds = array<i64: 1, 256>}, {pipeline_mode = #tpu.pipeline_mode<synchronous>, transform_indices = @transform_3, window_bounds = array<i64: 1, 128>}, {transform_indices = @transform_4, window_bounds = array<i64: 2, 128>}, {transform_indices = @transform_5, window_bounds = array<i64: 2, 128>}]} {
    %c0 = arith.constant 0 : index
    %c0_0 = arith.constant 0 : index
    %0 = vector.load %arg1[%c0, %c0_0] : memref<2x128xf32, #tpu.memory_space<vmem>>, vector<2x128xf32>
    %c0_1 = arith.constant 0 : index
    %c0_2 = arith.constant 0 : index
    %1 = vector.load %arg2[%c0_1, %c0_2] : memref<128x256xf32, #tpu.memory_space<vmem>>, vector<128x256xf32>
    %cst = arith.constant dense<0.000000e+00> : vector<2x256xf32>
    %2 = tpu.matmul %0, %1, %cst {dimension_numbers = #tpu.dot_dimension_numbers<[1], [0], [0], [1], [0, 0, 1, 1], [], []>} : vector<2x128xf32>, vector<128x256xf32>, vector<2x256xf32> -> vector<2x256xf32>
    %c0_3 = arith.constant 0 : index
    %c0_4 = arith.constant 0 : index
    %3 = vector.load %arg3[%c0_3, %c0_4] : memref<1x256xf32, #tpu.memory_space<vmem>>, vector<1x256xf32>
    %4 = vector.broadcast %3 : vector<1x256xf32> to vector<2x256xf32>
    %5 = arith.addf %2, %4 : vector<2x256xf32>
    %6 = vector.extract_strided_slice %5 {offsets = [0, 0], sizes = [2, 128], strides = [1, 1]} : vector<2x256xf32> to vector<2x128xf32>
    %c0_5 = arith.constant 0 : index
    %c0_6 = arith.constant 0 : index
    %7 = vector.load %arg5[%c0_5, %c0_6] : memref<2x128xf32, #tpu.memory_space<vmem>>, vector<2x128xf32>
    tpu.vector_store %arg5[%c0_5, %c0_6], %6 {strides = array<i32>} : memref<2x128xf32, #tpu.memory_space<vmem>>, vector<2x128xf32>,
    %8 = vector.extract_strided_slice %5 {offsets = [0, 128], sizes = [2, 128], strides = [1, 1]} : vector<2x256xf32> to vector<2x128xf32>
    %c0_7 = arith.constant 0 : index
    %c0_8 = arith.constant 0 : index
    %9 = vector.load %arg4[%c0_7, %c0_8] : memref<1x128xf32, #tpu.memory_space<vmem>>, vector<1x128xf32>
    %cst_9 = arith.constant 5.000000e-01 : f32
    %10 = vector.broadcast %cst_9 : f32 to vector<1x128xf32>
    %11 = arith.cmpf ogt, %9, %10 : vector<1x128xf32>
    %cst_10 = arith.constant 0.000000e+00 : f32
    %12 = vector.broadcast %cst_10 : f32 to vector<2x128xf32>
    %13 = arith.maximumf %8, %12 : vector<2x128xf32>
    %cst_11 = arith.constant 9.99999974E-6 : f32
    %14 = vector.broadcast %cst_11 : f32 to vector<2x128xf32>
    %15 = arith.addf %13, %14 : vector<2x128xf32>
    %16 = vector.shape_cast %11 : vector<1x128xi1> to vector<1x128xi1>
    %17 = vector.broadcast %16 : vector<1x128xi1> to vector<2x128xi1>
    %18 = arith.select %17, %15, %8 : vector<2x128xi1>, vector<2x128xf32>
    %c0_12 = arith.constant 0 : index
    %c0_13 = arith.constant 0 : index
    %19 = vector.load %arg6[%c0_12, %c0_13] : memref<2x128xf32, #tpu.memory_space<vmem>>, vector<2x128xf32>
    tpu.vector_store %arg6[%c0_12, %c0_13], %18 {strides = array<i32>} : memref<2x128xf32, #tpu.memory_space<vmem>>, vector<2x128xf32>,
    return
  }
  func.func @transform_0(%arg0: i32) -> (i32, i32) {
    %c0_i32 = arith.constant 0 : i32
    %c0_i32_0 = arith.constant 0 : i32
    return %arg0, %c0_i32 : i32, i32
  }
  func.func @transform_1(%arg0: i32) -> (i32, i32) {
    %c0_i32 = arith.constant 0 : i32
    %c0_i32_0 = arith.constant 0 : i32
    %c0_i32_1 = arith.constant 0 : i32
    return %c0_i32, %c0_i32_0 : i32, i32
  }
  func.func @transform_2(%arg0: i32) -> (i32, i32) {
    %c0_i32 = arith.constant 0 : i32
    %c0_i32_0 = arith.constant 0 : i32
    %c0_i32_1 = arith.constant 0 : i32
    return %c0_i32, %c0_i32_0 : i32, i32
  }
  func.func @transform_3(%arg0: i32) -> (i32, i32) {
    %c0_i32 = arith.constant 0 : i32
    %c0_i32_0 = arith.constant 0 : i32
    %c0_i32_1 = arith.constant 0 : i32
    return %c0_i32, %c0_i32_0 : i32, i32
  }
  func.func @transform_4(%arg0: i32) -> (i32, i32) {
    %c0_i32 = arith.constant 0 : i32
    %c0_i32_0 = arith.constant 0 : i32
    return %arg0, %c0_i32 : i32, i32
  }
  func.func @transform_5(%arg0: i32) -> (i32, i32) {
    %c0_i32 = arith.constant 0 : i32
    %c0_i32_0 = arith.constant 0 : i32
    return %arg0, %c0_i32 : i32, i32
  }
}

</mosaic_0001>

<llo_original>
// kernel: portfolio_net_forward.1
$region0: #{portfolio_net_forward.1}
  #allocation0 [shape = 'u32[]', space=smem, size = 0x4, offset = 0x4, fixed_abs, tag = 'smem constant byte address 0x4 - core index']
  #allocation1 [shape = 'u32[144,128]{1,0:T(1,128)}', space=vmem, size = 0x12000, scoped, tag = 'internal scratch']
  %s0 = inlined_call_operand.vmem [shape: f32[2,128], index: 0, kind: input, shape index: {}]
  %s1 = inlined_call_operand.hbm [shape: f32[128,256], index: 1, kind: input, shape index: {}]
  %s2 = inlined_call_operand.vmem [shape: f32[1,256], index: 2, kind: input, shape index: {}]
  %s3 = inlined_call_operand.vmem [shape: f32[1,128], index: 3, kind: input, shape index: {}]
  %s4 = inlined_call_operand.hbm [shape: f32[2,128], index: 4, kind: output, shape index: {0}]
  %s5 = inlined_call_operand.vmem [shape: f32[2,128], index: 5, kind: output, shape index: {1}]
  %6 = xla_tuple %s4, %s5
  %s7 = sld [smem:[#allocation0]]
  $region38: #{portfolio_net_forward.1} parent=0
    _
  %s9 = ssub.s32 1, %s7
  %s10 = scalar_select 0, %s9, %s7
  $region1: #{portfolio_net_forward.1} parent=0
    #allocation2 [shape = 'u8[131072]{0}', space=vmem, size = 0x20000, scoped, tag = 'input window, operand 1, single buffered']
    #allocation3 [shape = 's32[1]{0}', space=sflag, size = 0x4, scoped, tag = 'scoped memory for portfolio_net_forward.1']
    #allocation4 [shape = 's32[1]{0}', space=sflag, size = 0x4, scoped, tag = 'scoped memory for portfolio_net_forward.1']
    #allocation5 [shape = 'u8[1024]{0}', space=vmem, size = 0x400, scoped, tag = 'output window, operand 0, single buffered']
    %11 = vsyncpa [#allocation3], 0
    %12 = vsyncpa [#allocation4], 0
    // Predicated region
    $region2: #{portfolio_net_forward.1} parent=1 // pred_check
      _
    $region3: #{portfolio_net_forward.1} parent=1 // pred_check_branch
      %14 = sbr.rel (0) target = $region5
    $region4: #{portfolio_net_forward.1} parent=1 // pred_region
      _
    $region5: #{portfolio_net_forward.1} parent=1 // pred_fallthru
      _
    // Predicated region
    $region6: #{portfolio_net_forward.1} parent=1 // pred_check
      _
    $region7: #{portfolio_net_forward.1} parent=1 // pred_check_branch
      %16 = sbr.rel (0) target = $region9
    $region8: #{portfolio_net_forward.1} parent=1 // pred_region
      %s18 = ssub.s32 4096, 4096
      %19 = vsyncadd [#allocation3], %s18
      %s20 = sshll.u32 [#allocation2], 4
      %s21 = int_to_ptr.vmem [resolvable:$true] %s20
      %26 = dma.hbm_to_vmem [thread:$0]  %s1, 4096, %s21, [#allocation3], 256, 256, 16
    $region9: #{portfolio_net_forward.1} parent=1 // pred_fallthru
      _
    // Predicated region
    $region10: #{portfolio_net_forward.1} parent=1 // pred_check
      _
    $region11: #{portfolio_net_forward.1} parent=1 // pred_check_branch
      %28 = sbr.rel (0) target = $region13
    $region12: #{portfolio_net_forward.1} parent=1 // pred_region
      _
    $region13: #{portfolio_net_forward.1} parent=1 // pred_fallthru
      _
    // Predicated region
    $region14: #{portfolio_net_forward.1} parent=1 // pred_check
      _
    $region15: #{portfolio_net_forward.1} parent=1 // pred_check_branch
      %30 = sbr.rel (0) target = $region17
    $region16: #{portfolio_net_forward.1} parent=1 // pred_region
      _
    $region17: #{portfolio_net_forward.1} parent=1 // pred_fallthru
      _
    // Predicated region
    $region18: #{portfolio_net_forward.1} parent=1 // pred_check
      _
    $region19: #{portfolio_net_forward.1} parent=1 // pred_check_branch
      %32 = sbr.rel (0) target = $region21
    $region20: #{portfolio_net_forward.1} parent=1 // pred_region
      %33 = dma.done [#allocation3], 4096
    $region21: #{portfolio_net_forward.1} parent=1 // pred_fallthru
      _
    %v34 = vld [vmem:[%s0] sm:$0x3]
    %v35 = vld [vmem:[#allocation2] sm:$0xff]
    %v36 = vld [vmem:[#allocation2 + $0x8] sm:$0xff]
    %v37 = vld [vmem:[#allocation2 + $0x10] sm:$0xff]
    %v38 = vld [vmem:[#allocation2 + $0x18] sm:$0xff]
    %v39 = vld [vmem:[#allocation2 + $0x20] sm:$0xff]
    %v40 = vld [vmem:[#allocation2 + $0x28] sm:$0xff]
    %v41 = vld [vmem:[#allocation2 + $0x30] sm:$0xff]
    %v42 = vld [vmem:[#allocation2 + $0x38] sm:$0xff]
    %v43 = vld [vmem:[#allocation2 + $0x40] sm:$0xff]
    %v44 = vld [vmem:[#allocation2 + $0x48] sm:$0xff]
    %v45 = vld [vmem:[#allocation2 + $0x50] sm:$0xff]
    %v46 = vld [vmem:[#allocation2 + $0x58] sm:$0xff]
    %v47 = vld [vmem:[#allocation2 + $0x60] sm:$0xff]
    %v48 = vld [vmem:[#allocation2 + $0x68] sm:$0xff]
    %v49 = vld [vmem:[#allocation2 + $0x70] sm:$0xff]
    %v50 = vld [vmem:[#allocation2 + $0x78] sm:$0xff]
    %v51 = vld [vmem:[#allocation2 + $0x80] sm:$0xff]
    %v52 = vld [vmem:[#allocation2 + $0x88] sm:$0xff]
    %v53 = vld [vmem:[#allocation2 + $0x90] sm:$0xff]
    %v54 = vld [vmem:[#allocation2 + $0x98] sm:$0xff]
    %v55 = vld [vmem:[#allocation2 + $0xa0] sm:$0xff]
    %v56 = vld [vmem:[#allocation2 + $0xa8] sm:$0xff]
    %v57 = vld [vmem:[#allocation2 + $0xb0] sm:$0xff]
    %v58 = vld [vmem:[#allocation2 + $0xb8] sm:$0xff]
    %v59 = vld [vmem:[#allocation2 + $0xc0] sm:$0xff]
    %v60 = vld [vmem:[#allocation2 + $0xc8] sm:$0xff]
    %v61 = vld [vmem:[#allocation2 + $0xd0] sm:$0xff]
    %v62 = vld [vmem:[#allocation2 + $0xd8] sm:$0xff]
    %v63 = vld [vmem:[#allocation2 + $0xe0] sm:$0xff]
    %v64 = vld [vmem:[#allocation2 + $0xe8] sm:$0xff]
    %v65 = vld [vmem:[#allocation2 + $0xf0] sm:$0xff]
    %v66 = vld [vmem:[#allocation2 + $0xf8] sm:$0xff]
    %v67 = vld [vmem:[%s2] sm:$0x3]
    %v69 = vlaneseq
    %v70 = vshrl.u32 %v69, 7
    %v71 = vsub.s32 0, %v70
    %v72 = vrot.slane %v67, %v71
    %v73 = vlaneseq
    %v74 = vshrl.u32 %v73, 7
    %v75 = vsub.s32 1, %v74
    %v76 = vrot.slane %v67, %v75
    %79 = vmatprep.subr.mxu0 %v36
    %80 = vmatpush1.msra.mxu0 %v35
    %81 = vmatprep.subr.mxu0 %v38
    %82 = vmatpush1.msra.mxu0 %v37
    %83 = vmatprep.subr.mxu0 %v40
    %84 = vmatpush1.msra.mxu0 %v39
    %85 = vmatprep.subr.mxu0 %v42
    %86 = vmatpush1.msra.mxu0 %v41
    %87 = vmatprep.subr.mxu0 %v44
    %88 = vmatpush1.msra.mxu0 %v43
    %89 = vmatprep.subr.mxu0 %v46
    %90 = vmatpush1.msra.mxu0 %v45
    %91 = vmatprep.subr.mxu0 %v48
    %92 = vmatpush1.msra.mxu0 %v47
    %93 = vmatprep.subr.mxu0 %v50
    %94 = vmatpush1.msra.mxu0 %v49
    %95 = vmatprep.subr.mxu0 %v52
    %96 = vmatpush1.msra.mxu0 %v51
    %97 = vmatprep.subr.mxu0 %v54
    %98 = vmatpush1.msra.mxu0 %v53
    %99 = vmatprep.subr.mxu0 %v56
    %100 = vmatpush1.msra.mxu0 %v55
    %101 = vmatprep.subr.mxu0 %v58
    %102 = vmatpush1.msra.mxu0 %v57
    %103 = vmatprep.subr.mxu0 %v60
    %104 = vmatpush1.msra.mxu0 %v59
    %105 = vmatprep.subr.mxu0 %v62
    %106 = vmatpush1.msra.mxu0 %v61
    %107 = vmatprep.subr.mxu0 %v64
    %108 = vmatpush1.msra.mxu0 %v63
    %109 = vmatprep.subr.mxu0 %v66
    %110 = vmatpush1.msra.mxu0 %v65
    %111 = vmatprep.subr.mxu0 0.0
    %112 = vmatpush1.msra.mxu0 0.0
    %113 = vmatprep.subr.mxu0 0.0
    %114 = vmatpush1.msra.mxu0 0.0
    %115 = vmatprep.subr.mxu0 0.0
    %116 = vmatpush1.msra.mxu0 0.0
    %117 = vmatprep.subr.mxu0 0.0
    %118 = vmatpush1.msra.mxu0 0.0
    %119 = vmatprep.subr.mxu0 0.0
    %120 = vmatpush1.msra.mxu0 0.0
    %121 = vmatprep.subr.mxu0 0.0
    %122 = vmatpush1.msra.mxu0 0.0
    %123 = vmatprep.subr.mxu0 0.0
    %124 = vmatpush1.msra.mxu0 0.0
    %125 = vmatprep.subr.mxu0 0.0
    %126 = vmatpush1.msra.mxu0 0.0
    %127 = vmatprep.subr.mxu0 0.0
    %128 = vmatpush1.msra.mxu0 0.0
    %129 = vmatprep.subr.mxu0 0.0
    %130 = vmatpush1.msra.mxu0 0.0
    %131 = vmatprep.subr.mxu0 0.0
    %132 = vmatpush1.msra.mxu0 0.0
    %133 = vmatprep.subr.mxu0 0.0
    %134 = vmatpush1.msra.mxu0 0.0
    %135 = vmatprep.subr.mxu0 0.0
    %136 = vmatpush1.msra.mxu0 0.0
    %137 = vmatprep.subr.mxu0 0.0
    %138 = vmatpush1.msra.mxu0 0.0
    %139 = vmatprep.subr.mxu0 0.0
    %140 = vmatpush1.msra.mxu0 0.0
    %141 = vmatprep.subr.mxu0 0.0
    %142 = vmatpush1.msra.mxu0 0.0
    %143 = vmatprep.mubr.f32.mxu0 0.0
    %144 = vmatmul.mubr.f32.gmra.mrb[0].mxu0 %v34
    %v145 = vpop.f32.mrb[0].mxu0
    %v146 = vadd.f32 %v72, %v145
    %v147 = vpop.f32.mrb[0].mxu0
    %v148 = vadd.f32 %v76, %v147
    %149 = vdwg.mxu0
    %150 = vst [vmem:[#allocation5] sm:$0x3] %v146
    %v151 = vld [vmem:[%s3] sm:$0x1]
    %vm152 = vcmp.gt.f32.partialorder %v151, 0.5
    %v153 = vmax.f32 %v148, 0.0
    %v154 = vadd.f32 %v153, 1e-05
    %v155 = vsel %vm152, 1, 0
    %v156 = vlaneseq
    %v157 = vshrl.u32 %v156, 7
    %v158 = vsub.s32 0, %v157
    %v159 = vrot.slane %v155, %v158
    %vm160 = vcmp.eq.s32.totalorder %v159, 1
    %v161 = vsel %vm160, %v154, %v148
    %162 = vst [vmem:[%s5] sm:$0x3] %v161
    // Predicated region
    $region22: #{portfolio_net_forward.1} parent=1 // pred_check
      _
    $region23: #{portfolio_net_forward.1} parent=1 // pred_check_branch
      %164 = sbr.rel (0) target = $region25
    $region24: #{portfolio_net_forward.1} parent=1 // pred_region
      %s166 = ssub.s32 32, 32
      %167 = vsyncadd [#allocation4], %s166
      %s169 = sshll.u32 [#allocation5], 4
      %s170 = int_to_ptr.vmem [resolvable:$true] %s169
      %172 = dma.vmem_to_hbm [thread:$0]  %s170, 32, %s4, [#allocation4]
    $region25: #{portfolio_net_forward.1} parent=1 // pred_fallthru
      _
    // Predicated region
    $region26: #{portfolio_net_forward.1} parent=1 // pred_check
      _
    $region27: #{portfolio_net_forward.1} parent=1 // pred_check_branch
      %174 = sbr.rel (0) target = $region29
    $region28: #{portfolio_net_forward.1} parent=1 // pred_region
      _
    $region29: #{portfolio_net_forward.1} parent=1 // pred_fallthru
      _
    // Predicated region
    $region30: #{portfolio_net_forward.1} parent=1 // pred_check
      _
    $region31: #{portfolio_net_forward.1} parent=1 // pred_check_branch
      %176 = sbr.rel (0) target = $region33
    $region32: #{portfolio_net_forward.1} parent=1 // pred_region
      %177 = dma.done [#allocation4], 32
    $region33: #{portfolio_net_forward.1} parent=1 // pred_fallthru
      _
    // Predicated region
    $region34: #{portfolio_net_forward.1} parent=1 // pred_check
      _
    $region35: #{portfolio_net_forward.1} parent=1 // pred_check_branch
      %179 = sbr.rel (0) target = $region37
    $region36: #{portfolio_net_forward.1} parent=1 // pred_region
      _
    $region37: #{portfolio_net_forward.1} parent=1 // pred_fallthru
      _
    %180 = vsyncpa [#allocation3], 1
    %181 = vsyncpa [#allocation4], 1

</llo_original>
